<compile_context>
chip_gen: v7x
topology: tpu7x:2x2x1
jax: 0.10.0
libtpu: 0.0.40
codegen_flags: <defaults>
</compile_context>

<pallas_src>
import functools

import jax
import jax.numpy as jnp
from jax import lax
from jax.experimental import pallas as pl
from jax.experimental.pallas import tpu as pltpu

_PAD_NEG = -1e30  # bias for padded class columns: exp() underflows to 0, never wins max


def _round_up(a: int, b: int) -> int:
    return (a + b - 1) // b * b


def fc_model_kernel(x_ref, w1_ref, b1_ref, w2_ref, b2_ref, o_ref):
    # x_ref:  (TILE_N, nfeat)        compute dtype (bf16 by default)
    # w1_ref: (nhid, nfeat)          PyTorch layout, compute dtype
    # b1_ref: (1, nhid)              f32
    # w2_ref: (nclass_pad, nhid)     PyTorch layout (zero-padded rows), compute dtype
    # b2_ref: (1, nclass_pad)        f32 (pad entries = -1e30)
    # o_ref:  (TILE_N, nclass_pad)   f32

    x = x_ref[...]

    # fc1: x @ W1^T on the MXU with f32 accumulation (contract last axes).
    h = lax.dot_general(
        x, w1_ref[...],
        dimension_numbers=(((1,), (1,)), ((), ())),
        preferred_element_type=jnp.float32,
    ) + b1_ref[...]
    h = jnp.maximum(h, 0.0)                       # ReLU in f32 (VPU, v5e-safe)

    # fc2: h @ W2^T (cast activations back to the MXU operand dtype).
    z = lax.dot_general(
        h.astype(w2_ref.dtype), w2_ref[...],
        dimension_numbers=(((1,), (1,)), ((), ())),
        preferred_element_type=jnp.float32,
    ) + b2_ref[...]

    # Numerically stable log_softmax over the (padded) class dim in f32.
    # Padded columns carry a -1e30 bias -> exp()==0, so they don't perturb the result.
    m = jnp.max(z, axis=-1, keepdims=True)
    s = z - m
    lse = jnp.log(jnp.sum(jnp.exp(s), axis=-1, keepdims=True))
    o_ref[...] = (s - lse).astype(o_ref.dtype)


@functools.partial(jax.jit, static_argnames=("compute_dtype", "tile_n_max"))
def fc_model_forward(x, w1, b1, w2, b2, *, compute_dtype=jnp.bfloat16, tile_n_max=512):
    """Forward pass of FcModel.

    x:  (N, nfeat)
    w1: (nhid, nfeat), b1: (nhid,)     -- PyTorch nn.Linear conventions
    w2: (nclass, nhid), b2: (nclass,)
    Returns (N, nclass) f32 log-probabilities.
    """
    N, nfeat = x.shape
    nhid = w1.shape[0]
    nclass = w2.shape[0]

    # ---- padding / tiling decisions (static) -------------------------------
    nclass_pad = _round_up(nclass, 128)            # lane-dense output stores
    n_pad = _round_up(max(N, 16), 16)              # bf16 sublane-friendly batch
    if n_pad <= tile_n_max:
        tile_n = n_pad
    else:
        tile_n = tile_n_max
        n_pad = _round_up(N, tile_n)
    grid = (n_pad // tile_n,)

    # ---- operand prep (cheap; padding + dtype cast only, no transpose) ------
    xp = jnp.pad(x.astype(compute_dtype), ((0, n_pad - N), (0, 0)))
    w1c = w1.astype(compute_dtype)                                    # (nhid, nfeat)
    b1r = b1.astype(jnp.float32).reshape(1, nhid)
    w2p = jnp.pad(w2.astype(compute_dtype), ((0, nclass_pad - nclass), (0, 0)))
    b2p = jnp.pad(b2.astype(jnp.float32), (0, nclass_pad - nclass),
                  constant_values=_PAD_NEG).reshape(1, nclass_pad)

    # ---- VMEM budget (sized against v7x's 64 MiB physical / 32 MiB default) -
    csize = jnp.dtype(compute_dtype).itemsize
    vmem_need = (
        2 * tile_n * nfeat * csize                       # double-buffered x tiles
        + 2 * tile_n * nclass_pad * 4                    # double-buffered out tiles (f32)
        + 2 * (nhid * nfeat + nclass_pad * nhid) * csize # resident weights
        + 2 * 8 * (nhid + nclass_pad) * 4                # biases (sublane padded)
        + 4 * tile_n * (nhid + nclass_pad)               # f32 intermediates
    )
    vmem_limit = int(min(48 * 1024 * 1024, max(8 * 1024 * 1024, 2 * vmem_need)))

    cost = pl.CostEstimate(
        flops=2 * n_pad * (nfeat * nhid + nhid * nclass_pad),
        transcendentals=n_pad * nclass_pad,              # exp() in the softmax
        bytes_accessed=(xp.size * csize + w1c.size * csize + w2p.size * csize
                        + b1r.size * 4 + b2p.size * 4 + n_pad * nclass_pad * 4),
    )

    grid_spec = pltpu.PrefetchScalarGridSpec(
        num_scalar_prefetch=0,
        grid=grid,
        in_specs=[
            pl.BlockSpec((tile_n, nfeat), lambda i: (i, 0)),        # x: streamed
            pl.BlockSpec((nhid, nfeat), lambda i: (0, 0)),          # W1: resident
            pl.BlockSpec((1, nhid), lambda i: (0, 0)),              # b1: resident
            pl.BlockSpec((nclass_pad, nhid), lambda i: (0, 0)),     # W2: resident
            pl.BlockSpec((1, nclass_pad), lambda i: (0, 0)),        # b2: resident
        ],
        out_specs=pl.BlockSpec((tile_n, nclass_pad), lambda i: (i, 0)),
    )

    out_padded = pl.pallas_call(
        fc_model_kernel,
        out_shape=jax.ShapeDtypeStruct((n_pad, nclass_pad), jnp.float32),
        grid_spec=grid_spec,
        compiler_params=pltpu.CompilerParams(
            dimension_semantics=("parallel",),           # batch rows independent -> 2 TCs on v7x
            vmem_limit_bytes=vmem_limit,
        ),
        cost_estimate=cost,
    )(xp, w1c, b1r, w2p, b2p)

    return out_padded[:N, :nclass]

    # TODO(synk): if nfeat ever grows large, add a K-reduction grid axis with a
    # VMEM f32 accumulator (pl.when init/finalize) instead of one full-K block.


def reference_forward(x, w1, b1, w2, b2):
    h = jnp.maximum(x @ w1.T + b1, 0.0)
    z = h @ w2.T + b2
    return jax.nn.log_softmax(z, axis=1)


if __name__ == "__main__":
    # Small shapes consistent with FcModel(nfeat, nhid, nclass)
    N, nfeat, nhid, nclass = 8, 32, 32, 16

    key = jax.random.PRNGKey(0)
    kx, k1, k2, k3, k4 = jax.random.split(key, 5)

    x = jax.random.normal(kx, (N, nfeat), dtype=jnp.float32)
    # PyTorch Linear parameter shapes: weight=(out, in), bias=(out,)
    w1 = jax.random.normal(k1, (nhid, nfeat), dtype=jnp.float32) * 0.1
    b1 = jax.random.normal(k2, (nhid,), dtype=jnp.float32) * 0.1
    w2 = jax.random.normal(k3, (nclass, nhid), dtype=jnp.float32) * 0.1
    b2 = jax.random.normal(k4, (nclass,), dtype=jnp.float32) * 0.1

    out = fc_model_forward(x, w1, b1, w2, b2)
    out = jax.block_until_ready(out)
    assert out.shape == (N, nclass)

    # Valid log-probabilities: each row must logsumexp to ~0 (f32 epilogue).
    row_lse = jax.nn.logsumexp(out, axis=1)
    assert jnp.allclose(row_lse, 0.0, atol=1e-4), "rows do not normalize"

    # Match the f32 reference (bf16 matmul operands -> loosened tolerance).
    ref = reference_forward(x, w1, b1, w2, b2)
    assert jnp.allclose(out, ref, atol=3e-2, rtol=3e-2), "mismatch vs reference"

    print("KERNEL_OK")
</pallas_src>

<mosaic_0001>
module attributes {stable_mosaic.version = 11 : i64} {
  func.func @fc_model_kernel(%arg0: i32, %arg1: memref<16x32xbf16, #tpu.memory_space<vmem>>, %arg2: memref<32x32xbf16, #tpu.memory_space<vmem>>, %arg3: memref<1x32xf32, #tpu.memory_space<vmem>>, %arg4: memref<128x32xbf16, #tpu.memory_space<vmem>>, %arg5: memref<1x128xf32, #tpu.memory_space<vmem>>, %arg6: memref<16x128xf32, #tpu.memory_space<vmem>>) attributes {dimension_semantics = [#tpu.dimension_semantics<parallel>], iteration_bounds = array<i64: 1>, scalar_prefetch = 0 : i64, scratch_operands = 0 : i64, tpu.core_type = #tpu.core_type<tc>, window_params = [{transform_indices = @transform_0, window_bounds = array<i64: 16, 32>}, {pipeline_mode = #tpu.pipeline_mode<synchronous>, transform_indices = @transform_1, window_bounds = array<i64: 32, 32>}, {pipeline_mode = #tpu.pipeline_mode<synchronous>, transform_indices = @transform_2, window_bounds = array<i64: 1, 32>}, {pipeline_mode = #tpu.pipeline_mode<synchronous>, transform_indices = @transform_3, window_bounds = array<i64: 128, 32>}, {pipeline_mode = #tpu.pipeline_mode<synchronous>, transform_indices = @transform_4, window_bounds = array<i64: 1, 128>}, {transform_indices = @transform_5, window_bounds = array<i64: 16, 128>}]} {
    %c0 = arith.constant 0 : index
    %c0_0 = arith.constant 0 : index
    %0 = vector.load %arg1[%c0, %c0_0] : memref<16x32xbf16, #tpu.memory_space<vmem>>, vector<16x32xbf16>
    %c0_1 = arith.constant 0 : index
    %c0_2 = arith.constant 0 : index
    %1 = vector.load %arg2[%c0_1, %c0_2] : memref<32x32xbf16, #tpu.memory_space<vmem>>, vector<32x32xbf16>
    %cst = arith.constant dense<0.000000e+00> : vector<16x32xf32>
    %2 = tpu.matmul %0, %1, %cst {dimension_numbers = #tpu.dot_dimension_numbers<[1], [1], [0], [0], [0, 0, 1, 0], [], []>} : vector<16x32xbf16>, vector<32x32xbf16>, vector<16x32xf32> -> vector<16x32xf32>
    %c0_3 = arith.constant 0 : index
    %c0_4 = arith.constant 0 : index
    %3 = vector.load %arg3[%c0_3, %c0_4] : memref<1x32xf32, #tpu.memory_space<vmem>>, vector<1x32xf32>
    %4 = vector.broadcast %3 : vector<1x32xf32> to vector<16x32xf32>
    %5 = arith.addf %2, %4 : vector<16x32xf32>
    %cst_5 = arith.constant 0.000000e+00 : f32
    %6 = vector.broadcast %cst_5 : f32 to vector<16x32xf32>
    %7 = arith.maximumf %5, %6 : vector<16x32xf32>
    %8 = arith.truncf %7 : vector<16x32xf32> to vector<16x32xbf16>
    %c0_6 = arith.constant 0 : index
    %c0_7 = arith.constant 0 : index
    %9 = vector.load %arg4[%c0_6, %c0_7] : memref<128x32xbf16, #tpu.memory_space<vmem>>, vector<128x32xbf16>
    %cst_8 = arith.constant dense<0.000000e+00> : vector<16x128xf32>
    %10 = tpu.matmul %8, %9, %cst_8 {dimension_numbers = #tpu.dot_dimension_numbers<[1], [1], [0], [0], [0, 0, 1, 0], [], []>} : vector<16x32xbf16>, vector<128x32xbf16>, vector<16x128xf32> -> vector<16x128xf32>
    %c0_9 = arith.constant 0 : index
    %c0_10 = arith.constant 0 : index
    %11 = vector.load %arg5[%c0_9, %c0_10] : memref<1x128xf32, #tpu.memory_space<vmem>>, vector<1x128xf32>
    %12 = vector.broadcast %11 : vector<1x128xf32> to vector<16x128xf32>
    %13 = arith.addf %10, %12 : vector<16x128xf32>
    %cst_11 = arith.constant dense<0xFF800000> : vector<16xf32>
    %14 = vector.multi_reduction <maximumf>, %13, %cst_11 [1] : vector<16x128xf32> to vector<16xf32>
    %15 = vector.shape_cast %14 : vector<16xf32> to vector<16x1xf32>
    %16 = vector.broadcast %15 : vector<16x1xf32> to vector<16x128xf32>
    %17 = arith.subf %13, %16 : vector<16x128xf32>
    %18 = math.exp %17 : vector<16x128xf32>
    %cst_12 = arith.constant dense<0.000000e+00> : vector<16xf32>
    %19 = vector.multi_reduction <add>, %18, %cst_12 [1] : vector<16x128xf32> to vector<16xf32>
    %20 = vector.shape_cast %19 : vector<16xf32> to vector<16x1xf32>
    %21 = math.log %20 : vector<16x1xf32>
    %22 = vector.broadcast %21 : vector<16x1xf32> to vector<16x128xf32>
    %23 = arith.subf %17, %22 : vector<16x128xf32>
    %c0_13 = arith.constant 0 : index
    %c0_14 = arith.constant 0 : index
    %24 = vector.load %arg6[%c0_13, %c0_14] : memref<16x128xf32, #tpu.memory_space<vmem>>, vector<16x128xf32>
    tpu.vector_store %arg6[%c0_13, %c0_14], %23 {strides = array<i32>} : memref<16x128xf32, #tpu.memory_space<vmem>>, vector<16x128xf32>,
    return
  }
  func.func @transform_0(%arg0: i32) -> (i32, i32) {
    %c0_i32 = arith.constant 0 : i32
    %c0_i32_0 = arith.constant 0 : i32
    return %arg0, %c0_i32 : i32, i32
  }
  func.func @transform_1(%arg0: i32) -> (i32, i32) {
    %c0_i32 = arith.constant 0 : i32
    %c0_i32_0 = arith.constant 0 : i32
    %c0_i32_1 = arith.constant 0 : i32
    return %c0_i32, %c0_i32_0 : i32, i32
  }
  func.func @transform_2(%arg0: i32) -> (i32, i32) {
    %c0_i32 = arith.constant 0 : i32
    %c0_i32_0 = arith.constant 0 : i32
    %c0_i32_1 = arith.constant 0 : i32
    return %c0_i32, %c0_i32_0 : i32, i32
  }
  func.func @transform_3(%arg0: i32) -> (i32, i32) {
    %c0_i32 = arith.constant 0 : i32
    %c0_i32_0 = arith.constant 0 : i32
    %c0_i32_1 = arith.constant 0 : i32
    return %c0_i32, %c0_i32_0 : i32, i32
  }
  func.func @transform_4(%arg0: i32) -> (i32, i32) {
    %c0_i32 = arith.constant 0 : i32
    %c0_i32_0 = arith.constant 0 : i32
    %c0_i32_1 = arith.constant 0 : i32
    return %c0_i32, %c0_i32_0 : i32, i32
  }
  func.func @transform_5(%arg0: i32) -> (i32, i32) {
    %c0_i32 = arith.constant 0 : i32
    %c0_i32_0 = arith.constant 0 : i32
    return %arg0, %c0_i32 : i32, i32
  }
}

</mosaic_0001>

<llo_original>
// kernel: fc_model_forward.1
$region0: #{fc_model_forward.1}
  #allocation0 [shape = 'u32[]', space=smem, size = 0x4, offset = 0x4, fixed_abs, tag = 'smem constant byte address 0x4 - core index']
  #allocation1 [shape = 'u32[144,128]{1,0:T(1,128)}', space=vmem, size = 0x12000, scoped, tag = 'internal scratch']
  %s0 = inlined_call_operand.vmem [shape: bf16[16,32], index: 0, kind: input, shape index: {}]
  %s1 = inlined_call_operand.vmem [shape: bf16[32,32], index: 1, kind: input, shape index: {}]
  %s2 = inlined_call_operand.vmem [shape: f32[1,32], index: 2, kind: input, shape index: {}]
  %s3 = inlined_call_operand.vmem [shape: bf16[128,32], index: 3, kind: input, shape index: {}]
  %s4 = inlined_call_operand.vmem [shape: f32[1,128], index: 4, kind: input, shape index: {}]
  %s5 = inlined_call_operand.vmem [shape: f32[16,128], index: 5, kind: output, shape index: {}]
  %s6 = sld [smem:[#allocation0]]
  $region30: #{fc_model_forward.1} parent=0
    _
  %s8 = ssub.s32 1, %s6
  %s9 = scalar_select 0, %s8, %s6
  // Predicated region
  $region2: #{fc_model_forward.1} parent=0 // pred_check
    _
  $region3: #{fc_model_forward.1} parent=0 // pred_check_branch
    %11 = sbr.rel (0) target = $region5
  $region4: #{fc_model_forward.1} parent=0 // pred_region
    _
  $region5: #{fc_model_forward.1} parent=0 // pred_fallthru
    _
  // Predicated region
  $region6: #{fc_model_forward.1} parent=0 // pred_check
    _
  $region7: #{fc_model_forward.1} parent=0 // pred_check_branch
    %13 = sbr.rel (0) target = $region9
  $region8: #{fc_model_forward.1} parent=0 // pred_region
    _
  $region9: #{fc_model_forward.1} parent=0 // pred_fallthru
    _
  // Predicated region
  $region10: #{fc_model_forward.1} parent=0 // pred_check
    _
  $region11: #{fc_model_forward.1} parent=0 // pred_check_branch
    %15 = sbr.rel (0) target = $region13
  $region12: #{fc_model_forward.1} parent=0 // pred_region
    _
  $region13: #{fc_model_forward.1} parent=0 // pred_fallthru
    _
  // Predicated region
  $region14: #{fc_model_forward.1} parent=0 // pred_check
    _
  $region15: #{fc_model_forward.1} parent=0 // pred_check_branch
    %17 = sbr.rel (0) target = $region17
  $region16: #{fc_model_forward.1} parent=0 // pred_region
    _
  $region17: #{fc_model_forward.1} parent=0 // pred_fallthru
    _
  // Predicated region
  $region18: #{fc_model_forward.1} parent=0 // pred_check
    _
  $region19: #{fc_model_forward.1} parent=0 // pred_check_branch
    %19 = sbr.rel (0) target = $region21
  $region20: #{fc_model_forward.1} parent=0 // pred_region
    _
  $region21: #{fc_model_forward.1} parent=0 // pred_fallthru
    _
  %v21 = vld [vmem:[%s0] sm:$0xf]
  %v22 = vld [vmem:[%s0 + $0x4] sm:$0xf]
  %v23 = vld [vmem:[%s1] sm:$0xf]
  %v24 = vld [vmem:[%s1 + $0x4] sm:$0xf]
  %v25 = vld [vmem:[%s1 + $0x8] sm:$0xf]
  %v26 = vld [vmem:[%s1 + $0xc] sm:$0xf]
  %v27 = vld [vmem:[%s2] sm:$0x1]
  %v29 = vlaneseq
  %v30 = vshrl.u32 %v29, 7
  %v31 = vsub.s32 0, %v30
  %v32 = vrot.slane %v27, %v31
  %v36 = vunpack.c.l.b16 %v21
  %v37 = vunpack.c.l.b16 %v22
  %v38 = vpack.c.b16 %v37, %v36
  %v43 = vunpack.c.l.b16 %v23
  %v44 = vunpack.c.l.b16 %v24
  %v45 = vunpack.c.l.b16 %v25
  %v46 = vunpack.c.l.b16 %v26
  %v47 = vpack.c.b16 %v44, %v43
  %v48 = vpack.c.b16 %v46, %v45
  %vm49 = vcmask 261120
  %v51 = vsel %vm49, %v38, 0
  %v54 = vsel %vm49, %v47, 0
  %v57 = vsel %vm49, %v48, 0
  %59 = vmatprep.subr.bf16.mxu0 0
  %60 = vmatpush1.bf16.xpose.msra.mxu0 %v54
  %61 = vmatprep.subr.bf16.mxu0 0
  %62 = vmatpush1.bf16.xpose.msra.mxu0 %v57
  %63 = vmatprep.subr.bf16.mxu0 0
  %64 = vmatpush1.bf16.xpose.msra.mxu0 0
  %65 = vmatprep.subr.bf16.mxu0 0
  %66 = vmatpush1.bf16.xpose.msra.mxu0 0
  %67 = vmatprep.subr.bf16.mxu0 0
  %68 = vmatpush1.bf16.xpose.msra.mxu0 0
  %69 = vmatprep.subr.bf16.mxu0 0
  %70 = vmatpush1.bf16.xpose.msra.mxu0 0
  %71 = vmatprep.subr.bf16.mxu0 0
  %72 = vmatpush1.bf16.xpose.msra.mxu0 0
  %73 = vmatprep.subr.bf16.mxu0 0
  %74 = vmatpush1.bf16.xpose.msra.mxu0 0
  %75 = vmatprep.subr.bf16.mxu0 0
  %76 = vmatpush1.bf16.xpose.msra.mxu0 0
  %77 = vmatprep.subr.bf16.mxu0 0
  %78 = vmatpush1.bf16.xpose.msra.mxu0 0
  %79 = vmatprep.subr.bf16.mxu0 0
  %80 = vmatpush1.bf16.xpose.msra.mxu0 0
  %81 = vmatprep.subr.bf16.mxu0 0
  %82 = vmatpush1.bf16.xpose.msra.mxu0 0
  %83 = vmatprep.subr.bf16.mxu0 0
  %84 = vmatpush1.bf16.xpose.msra.mxu0 0
  %85 = vmatprep.subr.bf16.mxu0 0
  %86 = vmatpush1.bf16.xpose.msra.mxu0 0
  %87 = vmatprep.subr.bf16.mxu0 0
  %88 = vmatpush1.bf16.xpose.msra.mxu0 0
  %89 = vmatprep.subr.bf16.mxu0 0
  %90 = vmatpush1.bf16.xpose.msra.mxu0 0
  %91 = vmatprep.mubr.bf16.mxu0 0
  %92 = vmatmul.mubr.bf16.gmra.mrb[0].mxu0 %v51
  %v93 = vpop.f32.mrb[0].mxu0
  %v94 = vadd.f32 %v32, %v93
  %v95 = vpop.f32.mrb[0].mxu0
  %v96 = vpop.f32.mrb[0].mxu0
  %v97 = vadd.f32 %v32, %v96
  %v98 = vpop.f32.mrb[0].mxu0
  %99 = vdwg.mxu0
  %v100 = vmax.f32 %v94, 0.0
  %v101 = vmax.f32 %v97, 0.0
  %v102 = vpack.c.bf16 %v101, %v100
  %v103 = vld [vmem:[%s3] sm:$0xf]
  %v104 = vld [vmem:[%s3 + $0x4] sm:$0xf]
  %v105 = vld [vmem:[%s3 + $0x8] sm:$0xf]
  %v106 = vld [vmem:[%s3 + $0xc] sm:$0xf]
  %v107 = vld [vmem:[%s3 + $0x10] sm:$0xf]
  %v108 = vld [vmem:[%s3 + $0x14] sm:$0xf]
  %v109 = vld [vmem:[%s3 + $0x18] sm:$0xf]
  %v110 = vld [vmem:[%s3 + $0x1c] sm:$0xf]
  %v111 = vld [vmem:[%s3 + $0x20] sm:$0xf]
  %v112 = vld [vmem:[%s3 + $0x24] sm:$0xf]
  %v113 = vld [vmem:[%s3 + $0x28] sm:$0xf]
  %v114 = vld [vmem:[%s3 + $0x2c] sm:$0xf]
  %v115 = vld [vmem:[%s3 + $0x30] sm:$0xf]
  %v116 = vld [vmem:[%s3 + $0x34] sm:$0xf]
  %v117 = vld [vmem:[%s3 + $0x38] sm:$0xf]
  %v118 = vld [vmem:[%s3 + $0x3c] sm:$0xf]
  %v119 = vld [vmem:[%s4] sm:$0x1]
  %v121 = vlaneseq
  %v122 = vshrl.u32 %v121, 7
  %v123 = vsub.s32 0, %v122
  %v124 = vrot.slane %v119, %v123
  %v142 = vunpack.c.l.b16 %v103
  %v143 = vunpack.c.l.b16 %v104
  %v144 = vunpack.c.l.b16 %v105
  %v145 = vunpack.c.l.b16 %v106
  %v146 = vunpack.c.l.b16 %v107
  %v147 = vunpack.c.l.b16 %v108
  %v148 = vunpack.c.l.b16 %v109
  %v149 = vunpack.c.l.b16 %v110
  %v150 = vunpack.c.l.b16 %v111
  %v151 = vunpack.c.l.b16 %v112
  %v152 = vunpack.c.l.b16 %v113
  %v153 = vunpack.c.l.b16 %v114
  %v154 = vunpack.c.l.b16 %v115
  %v155 = vunpack.c.l.b16 %v116
  %v156 = vunpack.c.l.b16 %v117
  %v157 = vunpack.c.l.b16 %v118
  %v158 = vpack.c.b16 %v143, %v142
  %v159 = vpack.c.b16 %v145, %v144
  %v160 = vpack.c.b16 %v147, %v146
  %v161 = vpack.c.b16 %v149, %v148
  %v162 = vpack.c.b16 %v151, %v150
  %v163 = vpack.c.b16 %v153, %v152
  %v164 = vpack.c.b16 %v155, %v154
  %v165 = vpack.c.b16 %v157, %v156
  %v167 = vsel %vm49, %v102, 0
  %v170 = vsel %vm49, %v158, 0
  %v173 = vsel %vm49, %v159, 0
  %v176 = vsel %vm49, %v160, 0
  %v179 = vsel %vm49, %v161, 0
  %v182 = vsel %vm49, %v162, 0
  %v185 = vsel %vm49, %v163, 0
  %v188 = vsel %vm49, %v164, 0
  %v191 = vsel %vm49, %v165, 0
  %193 = vmatprep.subr.bf16.mxu0 0
  %194 = vmatpush1.bf16.xpose.msra.mxu0 %v170
  %195 = vmatprep.subr.bf16.mxu0 0
  %196 = vmatpush1.bf16.xpose.msra.mxu0 %v173
  %197 = vmatprep.subr.bf16.mxu0 0
  %198 = vmatpush1.bf16.xpose.msra.mxu0 %v176
  %199 = vmatprep.subr.bf16.mxu0 0
  %200 = vmatpush1.bf16.xpose.msra.mxu0 %v179
  %201 = vmatprep.subr.bf16.mxu0 0
  %202 = vmatpush1.bf16.xpose.msra.mxu0 %v182
  %203 = vmatprep.subr.bf16.mxu0 0
  %204 = vmatpush1.bf16.xpose.msra.mxu0 %v185
  %205 = vmatprep.subr.bf16.mxu0 0
  %206 = vmatpush1.bf16.xpose.msra.mxu0 %v188
  %207 = vmatprep.subr.bf16.mxu0 0
  %208 = vmatpush1.bf16.xpose.msra.mxu0 %v191
  %209 = vmatprep.subr.bf16.mxu0 0
  %210 = vmatpush1.bf16.xpose.msra.mxu0 0
  %211 = vmatprep.subr.bf16.mxu0 0
  %212 = vmatpush1.bf16.xpose.msra.mxu0 0
  %213 = vmatprep.subr.bf16.mxu0 0
  %214 = vmatpush1.bf16.xpose.msra.mxu0 0
  %215 = vmatprep.subr.bf16.mxu0 0
  %216 = vmatpush1.bf16.xpose.msra.mxu0 0
  %217 = vmatprep.subr.bf16.mxu0 0
  %218 = vmatpush1.bf16.xpose.msra.mxu0 0
  %219 = vmatprep.subr.bf16.mxu0 0
  %220 = vmatpush1.bf16.xpose.msra.mxu0 0
  %221 = vmatprep.subr.bf16.mxu0 0
  %222 = vmatpush1.bf16.xpose.msra.mxu0 0
  %223 = vmatprep.subr.bf16.mxu0 0
  %224 = vmatpush1.bf16.xpose.msra.mxu0 0
  %225 = vmatprep.mubr.bf16.mxu0 0
  %226 = vmatmul.mubr.bf16.gmra.mrb[0].mxu0 %v167
  %v227 = vpop.f32.mrb[0].mxu0
  %v228 = vadd.f32 %v124, %v227
  %v229 = vpop.f32.mrb[0].mxu0
  %v230 = vpop.f32.mrb[0].mxu0
  %v231 = vadd.f32 %v124, %v230
  %v232 = vpop.f32.mrb[0].mxu0
  %233 = vdwg.mxu0
  %234 = vmax.xlane.f32.xlu0 %v228
  %v235 = vpop.xlane.xlu0 %234
  %236 = vmax.xlane.f32.xlu0 %v231
  %v237 = vpop.xlane.xlu0 %236
  %v238 = vsub.f32 %v228, %v235
  %v239 = vsub.f32 %v231, %v237
  %v240 = vmul.f32 %v238, 1.442695
  %v241 = vpow.pop %v240
  %v242 = vmul.f32 %v239, 1.442695
  %v243 = vpow.pop %v242
  %244 = vadd.xlane.f32.xlu0 %v241
  %v245 = vpop.xlane.xlu0 %244
  %246 = vadd.xlane.f32.xlu0 %v243
  %v247 = vpop.xlane.xlu0 %246
  %v248 = vlog2.pop %v245
  %v249 = vmul.f32 %v248, 0.6931472
  %v250 = vlog2.pop %v247
  %v251 = vmul.f32 %v250, 0.6931472
  %v252 = vsub.f32 %v238, %v249
  %v253 = vsub.f32 %v239, %v251
  %254 = vst [vmem:[%s5] sm:$0xff] %v252
  %255 = vst [vmem:[%s5 + $0x8] sm:$0xff] %v253
  // Predicated region
  $region22: #{fc_model_forward.1} parent=0 // pred_check
    _
  $region23: #{fc_model_forward.1} parent=0 // pred_check_branch
    %257 = sbr.rel (0) target = $region25
  $region24: #{fc_model_forward.1} parent=0 // pred_region
    _
  $region25: #{fc_model_forward.1} parent=0 // pred_fallthru
    _
  // Predicated region
  $region26: #{fc_model_forward.1} parent=0 // pred_check
    _
  $region27: #{fc_model_forward.1} parent=0 // pred_check_branch
    %259 = sbr.rel (0) target = $region29
  $region28: #{fc_model_forward.1} parent=0 // pred_region
    _
  $region29: #{fc_model_forward.1} parent=0 // pred_fallthru
    _

</llo_original>
